<compile_context>
chip_gen: v7x
topology: tpu7x:2x2x1
jax: 0.10.0
libtpu: 0.0.40
codegen_flags: <defaults>
</compile_context>

<pallas_src>
import functools

import jax
import jax.numpy as jnp
from jax.experimental import pallas as pl
from jax.experimental.pallas import tpu as pltpu


def _round_up(x, m):
    return ((x + m - 1) // m) * m


def _swish(y):
    # Standard PETS activation (SiLU / swish), computed in f32.
    return y * jax.nn.sigmoid(y)


def _fc_ensemble_kernel(x_ref, w_ref, b_ref, o_ref, *, activation, matmul_dtype):
    # x_ref: (E, tm, Din)   w_ref: (E, Din, tn)   b_ref: (E, 1, tn)   o_ref: (E, tm, tn)
    x = x_ref[...]
    w = w_ref[...]
    if matmul_dtype is not None:
        # bf16 MXU path for v6e/v7x; accumulation stays f32 below.
        x = x.astype(matmul_dtype)
        w = w.astype(matmul_dtype)
    # Batched matmul over the (small, static) ensemble axis, f32 accumulation on MXU.
    y = jnp.einsum("ebi,eio->ebo", x, w, preferred_element_type=jnp.float32)
    y = y + b_ref[...].astype(jnp.float32)  # (E, 1, tn) broadcasts over batch rows
    y = activation(y)
    o_ref[...] = y.astype(o_ref.dtype)


def fc_layer_forward(x, weight, bias, activation=_swish, use_bf16_matmul=False):
    """Ensemble FC forward: activation(bmm(x, weight) + bias[:, None, :])."""
    E, B, Din = x.shape
    _, _, Dout = weight.shape
    assert weight.shape == (E, Din, Dout)
    assert bias.shape == (E, Dout)

    itemsize = jnp.dtype(x.dtype).itemsize

    # ---- tile selection (sublane/lane aligned) ----
    tm = min(_round_up(B, 8), 256)        # sublane-aligned batch tile
    tn = min(_round_up(Dout, 128), 256)   # lane-dense output tile

    # Shrink tiles until the double-buffered working set fits a conservative
    # VMEM budget (v7x has only 64 MiB physical / 32 MiB scoped by default).
    vmem_budget = 24 * 1024 * 1024

    def _working_set(tm_, tn_):
        per_step = E * (tm_ * Din + Din * tn_ + tm_ * tn_ + tn_) * itemsize
        return 2 * per_step  # Pallas double-buffers each operand/output block

    while _working_set(tm, tn) > vmem_budget and (tm > 8 or tn > 128):
        if tm >= tn and tm > 8:
            tm = max(8, tm // 2)
        elif tn > 128:
            tn = max(128, tn // 2)
        else:
            break
    # TODO(synk): tile the contraction (Din) axis with a VMEM f32 accumulator
    # (K as a trailing 'arbitrary' grid axis) if input_dim ever grows so large
    # that a full-K block per step cannot fit VMEM.

    # ---- zero-pad so the grid divides evenly and output stores are lane-dense ----
    B_p = _round_up(B, tm)
    Dout_p = _round_up(Dout, tn)

    x_p = jnp.pad(x, ((0, 0), (0, B_p - B), (0, 0))) if B_p != B else x
    w_p = (jnp.pad(weight, ((0, 0), (0, 0), (0, Dout_p - Dout)))
           if Dout_p != Dout else weight)
    b_p = jnp.pad(bias, ((0, 0), (0, Dout_p - Dout))) if Dout_p != Dout else bias
    b_p = b_p.reshape(E, 1, Dout_p)

    grid = (B_p // tm, Dout_p // tn)

    kernel = functools.partial(
        _fc_ensemble_kernel,
        activation=activation,
        matmul_dtype=jnp.bfloat16 if use_bf16_matmul else None,
    )

    cost = pl.CostEstimate(
        flops=2 * E * B_p * Din * Dout_p,
        transcendentals=E * B_p * Dout_p,
        bytes_accessed=itemsize * (E * B_p * Din + E * Din * Dout_p
                                   + E * Dout_p + E * B_p * Dout_p),
    )

    out_p = pl.pallas_call(
        kernel,
        out_shape=jax.ShapeDtypeStruct((E, B_p, Dout_p), x.dtype),
        grid_spec=pltpu.PrefetchScalarGridSpec(
            num_scalar_prefetch=0,
            grid=grid,
            in_specs=[
                pl.BlockSpec((E, tm, Din), lambda m, n: (0, m, 0)),
                pl.BlockSpec((E, Din, tn), lambda m, n: (0, 0, n)),
                pl.BlockSpec((E, 1, tn), lambda m, n: (0, 0, n)),
            ],
            out_specs=pl.BlockSpec((E, tm, tn), lambda m, n: (0, m, n)),
        ),
        compiler_params=pltpu.CompilerParams(
            dimension_semantics=("parallel", "parallel"),
            vmem_limit_bytes=32 * 1024 * 1024,
        ),
        cost_estimate=cost,
    )(x_p, w_p, b_p)

    # Strip the padding back off.
    return out_p[:, :B, :Dout]


if __name__ == "__main__":
    # Small shapes consistent with the module: ensemble=4, batch=8,
    # input_dim=32, output_dim=32.
    E, B, Din, Dout = 4, 8, 32, 32

    key = jax.random.PRNGKey(0)
    kx, kw, kb = jax.random.split(key, 3)

    x = jax.random.normal(kx, (E, B, Din), dtype=jnp.float32)
    weight = jax.random.normal(kw, (E, Din, Dout), dtype=jnp.float32) / jnp.sqrt(
        2.0 * Din
    )
    bias = 0.01 * jax.random.normal(kb, (E, Dout), dtype=jnp.float32)

    out = fc_layer_forward(x, weight, bias)
    out = jax.block_until_ready(out)

    # Pure-JAX reference check (swish activation, the standard PETS choice).
    y_ref = jnp.einsum("ebi,eio->ebo", x, weight) + bias[:, None, :]
    y_ref = y_ref * jax.nn.sigmoid(y_ref)
    assert out.shape == (E, B, Dout)
    assert jnp.allclose(out, y_ref, atol=1e-5, rtol=1e-5)

    print("KERNEL_OK")
</pallas_src>

<mosaic_0001>
module attributes {stable_mosaic.version = 11 : i64} {
  func.func @_fc_ensemble_kernel(%arg0: i32, %arg1: i32, %arg2: memref<4x8x32xf32, #tpu.memory_space<vmem>>, %arg3: memref<4x32x128xf32, #tpu.memory_space<vmem>>, %arg4: memref<4x1x128xf32, #tpu.memory_space<vmem>>, %arg5: memref<4x8x128xf32, #tpu.memory_space<vmem>>) attributes {dimension_semantics = [#tpu.dimension_semantics<parallel>, #tpu.dimension_semantics<parallel>], iteration_bounds = array<i64: 1, 1>, scalar_prefetch = 0 : i64, scratch_operands = 0 : i64, tpu.core_type = #tpu.core_type<tc>, window_params = [{transform_indices = @transform_0, window_bounds = array<i64: 4, 8, 32>}, {transform_indices = @transform_1, window_bounds = array<i64: 4, 32, 128>}, {transform_indices = @transform_2, window_bounds = array<i64: 4, 1, 128>}, {transform_indices = @transform_3, window_bounds = array<i64: 4, 8, 128>}]} {
    %c0 = arith.constant 0 : index
    %c0_0 = arith.constant 0 : index
    %c0_1 = arith.constant 0 : index
    %0 = vector.load %arg2[%c0, %c0_0, %c0_1] : memref<4x8x32xf32, #tpu.memory_space<vmem>>, vector<4x8x32xf32>
    %c0_2 = arith.constant 0 : index
    %c0_3 = arith.constant 0 : index
    %c0_4 = arith.constant 0 : index
    %1 = vector.load %arg3[%c0_2, %c0_3, %c0_4] : memref<4x32x128xf32, #tpu.memory_space<vmem>>, vector<4x32x128xf32>
    "tpu.trace_start"() <{level = 10 : i32, message = "ebi,eio->ebo"}> : () -> ()
    %cst = arith.constant dense<0.000000e+00> : vector<4x8x128xf32>
    %2 = tpu.matmul %0, %1, %cst {dimension_numbers = #tpu.dot_dimension_numbers<[2], [1], [1], [2], [0, 0, 0, 1, 1, 2], [0], [0]>} : vector<4x8x32xf32>, vector<4x32x128xf32>, vector<4x8x128xf32> -> vector<4x8x128xf32>
    "tpu.trace_stop"() : () -> ()
    %c0_5 = arith.constant 0 : index
    %c0_6 = arith.constant 0 : index
    %c0_7 = arith.constant 0 : index
    %3 = vector.load %arg4[%c0_5, %c0_6, %c0_7] : memref<4x1x128xf32, #tpu.memory_space<vmem>>, vector<4x1x128xf32>
    %4 = vector.broadcast %3 : vector<4x1x128xf32> to vector<4x8x128xf32>
    %5 = arith.addf %2, %4 : vector<4x8x128xf32>
    %6 = arith.negf %5 : vector<4x8x128xf32>
    %7 = math.exp %6 : vector<4x8x128xf32>
    %cst_8 = arith.constant 1.000000e+00 : f32
    %8 = vector.broadcast %cst_8 : f32 to vector<4x8x128xf32>
    %9 = arith.addf %8, %7 : vector<4x8x128xf32>
    %10 = arith.divf %8, %9 : vector<4x8x128xf32>
    %11 = arith.mulf %5, %10 : vector<4x8x128xf32>
    %c0_9 = arith.constant 0 : index
    %c0_10 = arith.constant 0 : index
    %c0_11 = arith.constant 0 : index
    %12 = vector.load %arg5[%c0_9, %c0_10, %c0_11] : memref<4x8x128xf32, #tpu.memory_space<vmem>>, vector<4x8x128xf32>
    tpu.vector_store %arg5[%c0_9, %c0_10, %c0_11], %11 {strides = array<i32>} : memref<4x8x128xf32, #tpu.memory_space<vmem>>, vector<4x8x128xf32>,
    return
  }
  func.func @transform_0(%arg0: i32, %arg1: i32) -> (i32, i32, i32) {
    %c0_i32 = arith.constant 0 : i32
    %c0_i32_0 = arith.constant 0 : i32
    %c0_i32_1 = arith.constant 0 : i32
    return %c0_i32, %arg0, %c0_i32_0 : i32, i32, i32
  }
  func.func @transform_1(%arg0: i32, %arg1: i32) -> (i32, i32, i32) {
    %c0_i32 = arith.constant 0 : i32
    %c0_i32_0 = arith.constant 0 : i32
    %c0_i32_1 = arith.constant 0 : i32
    return %c0_i32, %c0_i32_0, %arg1 : i32, i32, i32
  }
  func.func @transform_2(%arg0: i32, %arg1: i32) -> (i32, i32, i32) {
    %c0_i32 = arith.constant 0 : i32
    %c0_i32_0 = arith.constant 0 : i32
    %c0_i32_1 = arith.constant 0 : i32
    return %c0_i32, %c0_i32_0, %arg1 : i32, i32, i32
  }
  func.func @transform_3(%arg0: i32, %arg1: i32) -> (i32, i32, i32) {
    %c0_i32 = arith.constant 0 : i32
    %c0_i32_0 = arith.constant 0 : i32
    return %c0_i32, %arg0, %arg1 : i32, i32, i32
  }
}

</mosaic_0001>

<llo_original>
// kernel: tpu_custom_call.1
$region0: #{tpu_custom_call.1}
  #allocation0 [shape = 'u32[]', space=smem, size = 0x4, offset = 0x4, fixed_abs, tag = 'smem constant byte address 0x4 - core index']
  #allocation1 [shape = 'u32[144,128]{1,0:T(1,128)}', space=vmem, size = 0x12000, scoped, tag = 'internal scratch']
  %s0 = inlined_call_operand.hbm [shape: f32[4,8,32], index: 0, kind: input, shape index: {}]
  %s1 = inlined_call_operand.hbm [shape: f32[4,32,128], index: 1, kind: input, shape index: {}]
  %s2 = inlined_call_operand.vmem [shape: f32[4,1,128], index: 2, kind: input, shape index: {}]
  %s3 = inlined_call_operand.hbm [shape: f32[4,8,128], index: 3, kind: output, shape index: {}]
  %s4 = sld [smem:[#allocation0]]
  $region30: #{tpu_custom_call.1} parent=0
    _
  %s6 = ssub.s32 1, %s4
  %s7 = scalar_select 0, %s6, %s4
  $region1: #{tpu_custom_call.1} parent=0
    #allocation2 [shape = 'u8[16384]{0}', space=vmem, size = 0x4000, scoped, tag = 'input window, operand 0, single buffered']
    #allocation3 [shape = 's32[1]{0}', space=sflag, size = 0x4, scoped, tag = 'scoped memory for tpu_custom_call.1']
    #allocation4 [shape = 's32[1]{0}', space=sflag, size = 0x4, scoped, tag = 'scoped memory for tpu_custom_call.1']
    #allocation5 [shape = 'u8[65536]{0}', space=vmem, size = 0x10000, scoped, tag = 'input window, operand 1, single buffered']
    #allocation6 [shape = 's32[1]{0}', space=sflag, size = 0x4, scoped, tag = 'scoped memory for tpu_custom_call.1']
    #allocation7 [shape = 'u8[16384]{0}', space=vmem, size = 0x4000, scoped, tag = 'output window, operand 0, single buffered']
    %8 = vsyncpa [#allocation3], 0
    %9 = vsyncpa [#allocation6], 0
    %10 = vsyncpa [#allocation4], 0
    // Predicated region
    $region2: #{tpu_custom_call.1} parent=1 // pred_check
      _
    $region3: #{tpu_custom_call.1} parent=1 // pred_check_branch
      %12 = sbr.rel (0) target = $region5
    $region4: #{tpu_custom_call.1} parent=1 // pred_region
      %s14 = ssub.s32 512, 512
      %15 = vsyncadd [#allocation3], %s14
      %s16 = sshll.u32 [#allocation2], 4
      %s17 = int_to_ptr.vmem [resolvable:$true] %s16
      %22 = dma.hbm_to_vmem [thread:$0]  %s0, 512, %s17, [#allocation3], 128, 128, 8
    $region5: #{tpu_custom_call.1} parent=1 // pred_fallthru
      _
    // Predicated region
    $region6: #{tpu_custom_call.1} parent=1 // pred_check
      _
    $region7: #{tpu_custom_call.1} parent=1 // pred_check_branch
      %24 = sbr.rel (0) target = $region9
    $region8: #{tpu_custom_call.1} parent=1 // pred_region
      %s26 = ssub.s32 2048, 2048
      %27 = vsyncadd [#allocation6], %s26
      %s28 = sshll.u32 [#allocation5], 4
      %s29 = int_to_ptr.vmem [resolvable:$true] %s28
      %34 = dma.hbm_to_vmem [thread:$0]  %s1, 2048, %s29, [#allocation6], 128, 128, 8
    $region9: #{tpu_custom_call.1} parent=1 // pred_fallthru
      _
    // Predicated region
    $region10: #{tpu_custom_call.1} parent=1 // pred_check
      _
    $region11: #{tpu_custom_call.1} parent=1 // pred_check_branch
      %36 = sbr.rel (0) target = $region13
    $region12: #{tpu_custom_call.1} parent=1 // pred_region
      _
    $region13: #{tpu_custom_call.1} parent=1 // pred_fallthru
      _
    // Predicated region
    $region14: #{tpu_custom_call.1} parent=1 // pred_check
      _
    $region15: #{tpu_custom_call.1} parent=1 // pred_check_branch
      %38 = sbr.rel (0) target = $region17
    $region16: #{tpu_custom_call.1} parent=1 // pred_region
      %39 = dma.done [#allocation3], 512
    $region17: #{tpu_custom_call.1} parent=1 // pred_fallthru
      _
    // Predicated region
    $region18: #{tpu_custom_call.1} parent=1 // pred_check
      _
    $region19: #{tpu_custom_call.1} parent=1 // pred_check_branch
      %41 = sbr.rel (0) target = $region21
    $region20: #{tpu_custom_call.1} parent=1 // pred_region
      %42 = dma.done [#allocation6], 2048
    $region21: #{tpu_custom_call.1} parent=1 // pred_fallthru
      _
    %v43 = vld [vmem:[#allocation2] sm:$0xff]
    %v44 = vld [vmem:[#allocation2 + $0x8] sm:$0xff]
    %v45 = vld [vmem:[#allocation2 + $0x10] sm:$0xff]
    %v46 = vld [vmem:[#allocation2 + $0x18] sm:$0xff]
    %v47 = vld [vmem:[#allocation5] sm:$0xff]
    %v48 = vld [vmem:[#allocation5 + $0x8] sm:$0xff]
    %v49 = vld [vmem:[#allocation5 + $0x10] sm:$0xff]
    %v50 = vld [vmem:[#allocation5 + $0x18] sm:$0xff]
    %v51 = vld [vmem:[#allocation5 + $0x20] sm:$0xff]
    %v52 = vld [vmem:[#allocation5 + $0x28] sm:$0xff]
    %v53 = vld [vmem:[#allocation5 + $0x30] sm:$0xff]
    %v54 = vld [vmem:[#allocation5 + $0x38] sm:$0xff]
    %v55 = vld [vmem:[#allocation5 + $0x40] sm:$0xff]
    %v56 = vld [vmem:[#allocation5 + $0x48] sm:$0xff]
    %v57 = vld [vmem:[#allocation5 + $0x50] sm:$0xff]
    %v58 = vld [vmem:[#allocation5 + $0x58] sm:$0xff]
    %v59 = vld [vmem:[#allocation5 + $0x60] sm:$0xff]
    %v60 = vld [vmem:[#allocation5 + $0x68] sm:$0xff]
    %v61 = vld [vmem:[#allocation5 + $0x70] sm:$0xff]
    %v62 = vld [vmem:[#allocation5 + $0x78] sm:$0xff]
    %v63 = vld [vmem:[%s2] sm:$0x1]
    %v64 = vld [vmem:[%s2 + $0x1] sm:$0x1]
    %v65 = vld [vmem:[%s2 + $0x2] sm:$0x1]
    %v66 = vld [vmem:[%s2 + $0x3] sm:$0x1]
    %v71 = vlaneseq
    %v72 = vshrl.u32 %v71, 7
    %v73 = vsub.s32 0, %v72
    %v74 = vrot.slane %v63, %v73
    %v75 = vlaneseq
    %v76 = vshrl.u32 %v75, 7
    %v77 = vsub.s32 0, %v76
    %v78 = vrot.slane %v64, %v77
    %v79 = vlaneseq
    %v80 = vshrl.u32 %v79, 7
    %v81 = vsub.s32 0, %v80
    %v82 = vrot.slane %v65, %v81
    %v83 = vlaneseq
    %v84 = vshrl.u32 %v83, 7
    %v85 = vsub.s32 0, %v84
    %v86 = vrot.slane %v66, %v85
    %vm91 = vcmask 261120
    %v93 = vsel %vm91, %v43, 0
    %95 = vmatprep.subr.mxu0 0.0
    %96 = vmatpush1.msra.mxu0 %v47
    %97 = vmatprep.subr.mxu0 0.0
    %98 = vmatpush1.msra.mxu0 %v48
    %99 = vmatprep.subr.mxu0 0.0
    %100 = vmatpush1.msra.mxu0 %v49
    %101 = vmatprep.subr.mxu0 0.0
    %102 = vmatpush1.msra.mxu0 %v50
    %103 = vmatprep.subr.mxu0 0.0
    %104 = vmatpush1.msra.mxu0 0.0
    %105 = vmatprep.subr.mxu0 0.0
    %106 = vmatpush1.msra.mxu0 0.0
    %107 = vmatprep.subr.mxu0 0.0
    %108 = vmatpush1.msra.mxu0 0.0
    %109 = vmatprep.subr.mxu0 0.0
    %110 = vmatpush1.msra.mxu0 0.0
    %111 = vmatprep.subr.mxu0 0.0
    %112 = vmatpush1.msra.mxu0 0.0
    %113 = vmatprep.subr.mxu0 0.0
    %114 = vmatpush1.msra.mxu0 0.0
    %115 = vmatprep.subr.mxu0 0.0
    %116 = vmatpush1.msra.mxu0 0.0
    %117 = vmatprep.subr.mxu0 0.0
    %118 = vmatpush1.msra.mxu0 0.0
    %119 = vmatprep.subr.mxu0 0.0
    %120 = vmatpush1.msra.mxu0 0.0
    %121 = vmatprep.subr.mxu0 0.0
    %122 = vmatpush1.msra.mxu0 0.0
    %123 = vmatprep.subr.mxu0 0.0
    %124 = vmatpush1.msra.mxu0 0.0
    %125 = vmatprep.subr.mxu0 0.0
    %126 = vmatpush1.msra.mxu0 0.0
    %127 = vmatprep.subr.mxu0 0.0
    %128 = vmatpush1.msra.mxu0 0.0
    %129 = vmatprep.subr.mxu0 0.0
    %130 = vmatpush1.msra.mxu0 0.0
    %131 = vmatprep.subr.mxu0 0.0
    %132 = vmatpush1.msra.mxu0 0.0
    %133 = vmatprep.subr.mxu0 0.0
    %134 = vmatpush1.msra.mxu0 0.0
    %135 = vmatprep.subr.mxu0 0.0
    %136 = vmatpush1.msra.mxu0 0.0
    %137 = vmatprep.subr.mxu0 0.0
    %138 = vmatpush1.msra.mxu0 0.0
    %139 = vmatprep.subr.mxu0 0.0
    %140 = vmatpush1.msra.mxu0 0.0
    %141 = vmatprep.subr.mxu0 0.0
    %142 = vmatpush1.msra.mxu0 0.0
    %143 = vmatprep.subr.mxu0 0.0
    %144 = vmatpush1.msra.mxu0 0.0
    %145 = vmatprep.subr.mxu0 0.0
    %146 = vmatpush1.msra.mxu0 0.0
    %147 = vmatprep.subr.mxu0 0.0
    %148 = vmatpush1.msra.mxu0 0.0
    %149 = vmatprep.subr.mxu0 0.0
    %150 = vmatpush1.msra.mxu0 0.0
    %151 = vmatprep.subr.mxu0 0.0
    %152 = vmatpush1.msra.mxu0 0.0
    %153 = vmatprep.subr.mxu0 0.0
    %154 = vmatpush1.msra.mxu0 0.0
    %155 = vmatprep.subr.mxu0 0.0
    %156 = vmatpush1.msra.mxu0 0.0
    %157 = vmatprep.subr.mxu0 0.0
    %158 = vmatpush1.msra.mxu0 0.0
    %159 = vmatprep.mubr.f32.mxu0 0.0
    %160 = vmatmul.mubr.f32.gmra.mrb[0].mxu0 %v93
    %v161 = vpop.f32.mrb[0].mxu0
    %v162 = vadd.f32 %v74, %v161
    %v163 = vpop.f32.mrb[0].mxu0
    %164 = vdwg.mxu0
    %v166 = vsel %vm91, %v44, 0
    %168 = vmatprep.subr.mxu0 0.0
    %169 = vmatpush1.msra.mxu0 %v51
    %170 = vmatprep.subr.mxu0 0.0
    %171 = vmatpush1.msra.mxu0 %v52
    %172 = vmatprep.subr.mxu0 0.0
    %173 = vmatpush1.msra.mxu0 %v53
    %174 = vmatprep.subr.mxu0 0.0
    %175 = vmatpush1.msra.mxu0 %v54
    %176 = vmatprep.subr.mxu0 0.0
    %177 = vmatpush1.msra.mxu0 0.0
    %178 = vmatprep.subr.mxu0 0.0
    %179 = vmatpush1.msra.mxu0 0.0
    %180 = vmatprep.subr.mxu0 0.0
    %181 = vmatpush1.msra.mxu0 0.0
    %182 = vmatprep.subr.mxu0 0.0
    %183 = vmatpush1.msra.mxu0 0.0
    %184 = vmatprep.subr.mxu0 0.0
    %185 = vmatpush1.msra.mxu0 0.0
    %186 = vmatprep.subr.mxu0 0.0
    %187 = vmatpush1.msra.mxu0 0.0
    %188 = vmatprep.subr.mxu0 0.0
    %189 = vmatpush1.msra.mxu0 0.0
    %190 = vmatprep.subr.mxu0 0.0
    %191 = vmatpush1.msra.mxu0 0.0
    %192 = vmatprep.subr.mxu0 0.0
    %193 = vmatpush1.msra.mxu0 0.0
    %194 = vmatprep.subr.mxu0 0.0
    %195 = vmatpush1.msra.mxu0 0.0
    %196 = vmatprep.subr.mxu0 0.0
    %197 = vmatpush1.msra.mxu0 0.0
    %198 = vmatprep.subr.mxu0 0.0
    %199 = vmatpush1.msra.mxu0 0.0
    %200 = vmatprep.subr.mxu0 0.0
    %201 = vmatpush1.msra.mxu0 0.0
    %202 = vmatprep.subr.mxu0 0.0
    %203 = vmatpush1.msra.mxu0 0.0
    %204 = vmatprep.subr.mxu0 0.0
    %205 = vmatpush1.msra.mxu0 0.0
    %206 = vmatprep.subr.mxu0 0.0
    %207 = vmatpush1.msra.mxu0 0.0
    %208 = vmatprep.subr.mxu0 0.0
    %209 = vmatpush1.msra.mxu0 0.0
    %210 = vmatprep.subr.mxu0 0.0
    %211 = vmatpush1.msra.mxu0 0.0
    %212 = vmatprep.subr.mxu0 0.0
    %213 = vmatpush1.msra.mxu0 0.0
    %214 = vmatprep.subr.mxu0 0.0
    %215 = vmatpush1.msra.mxu0 0.0
    %216 = vmatprep.subr.mxu0 0.0
    %217 = vmatpush1.msra.mxu0 0.0
    %218 = vmatprep.subr.mxu0 0.0
    %219 = vmatpush1.msra.mxu0 0.0
    %220 = vmatprep.subr.mxu0 0.0
    %221 = vmatpush1.msra.mxu0 0.0
    %222 = vmatprep.subr.mxu0 0.0
    %223 = vmatpush1.msra.mxu0 0.0
    %224 = vmatprep.subr.mxu0 0.0
    %225 = vmatpush1.msra.mxu0 0.0
    %226 = vmatprep.subr.mxu0 0.0
    %227 = vmatpush1.msra.mxu0 0.0
    %228 = vmatprep.subr.mxu0 0.0
    %229 = vmatpush1.msra.mxu0 0.0
    %230 = vmatprep.subr.mxu0 0.0
    %231 = vmatpush1.msra.mxu0 0.0
    %232 = vmatprep.mubr.f32.mxu0 0.0
    %233 = vmatmul.mubr.f32.gmra.mrb[0].mxu0 %v166
    %v234 = vpop.f32.mrb[0].mxu0
    %v235 = vadd.f32 %v78, %v234
    %v236 = vpop.f32.mrb[0].mxu0
    %237 = vdwg.mxu0
    %v239 = vsel %vm91, %v45, 0
    %241 = vmatprep.subr.mxu0 0.0
    %242 = vmatpush1.msra.mxu0 %v55
    %243 = vmatprep.subr.mxu0 0.0
    %244 = vmatpush1.msra.mxu0 %v56
    %245 = vmatprep.subr.mxu0 0.0
    %246 = vmatpush1.msra.mxu0 %v57
    %247 = vmatprep.subr.mxu0 0.0
    %248 = vmatpush1.msra.mxu0 %v58
    %249 = vmatprep.subr.mxu0 0.0
    %250 = vmatpush1.msra.mxu0 0.0
    %251 = vmatprep.subr.mxu0 0.0
    %252 = vmatpush1.msra.mxu0 0.0
    %253 = vmatprep.subr.mxu0 0.0
    %254 = vmatpush1.msra.mxu0 0.0
    %255 = vmatprep.subr.mxu0 0.0
    %256 = vmatpush1.msra.mxu0 0.0
    %257 = vmatprep.subr.mxu0 0.0
    %258 = vmatpush1.msra.mxu0 0.0
    %259 = vmatprep.subr.mxu0 0.0
    %260 = vmatpush1.msra.mxu0 0.0
    %261 = vmatprep.subr.mxu0 0.0
    %262 = vmatpush1.msra.mxu0 0.0
    %263 = vmatprep.subr.mxu0 0.0
    %264 = vmatpush1.msra.mxu0 0.0
    %265 = vmatprep.subr.mxu0 0.0
    %266 = vmatpush1.msra.mxu0 0.0
    %267 = vmatprep.subr.mxu0 0.0
    %268 = vmatpush1.msra.mxu0 0.0
    %269 = vmatprep.subr.mxu0 0.0
    %270 = vmatpush1.msra.mxu0 0.0
    %271 = vmatprep.subr.mxu0 0.0
    %272 = vmatpush1.msra.mxu0 0.0
    %273 = vmatprep.subr.mxu0 0.0
    %274 = vmatpush1.msra.mxu0 0.0
    %275 = vmatprep.subr.mxu0 0.0
    %276 = vmatpush1.msra.mxu0 0.0
    %277 = vmatprep.subr.mxu0 0.0
    %278 = vmatpush1.msra.mxu0 0.0
    %279 = vmatprep.subr.mxu0 0.0
    %280 = vmatpush1.msra.mxu0 0.0
    %281 = vmatprep.subr.mxu0 0.0
    %282 = vmatpush1.msra.mxu0 0.0
    %283 = vmatprep.subr.mxu0 0.0
    %284 = vmatpush1.msra.mxu0 0.0
    %285 = vmatprep.subr.mxu0 0.0
    %286 = vmatpush1.msra.mxu0 0.0
    %287 = vmatprep.subr.mxu0 0.0
    %288 = vmatpush1.msra.mxu0 0.0
    %289 = vmatprep.subr.mxu0 0.0
    %290 = vmatpush1.msra.mxu0 0.0
    %291 = vmatprep.subr.mxu0 0.0
    %292 = vmatpush1.msra.mxu0 0.0
    %293 = vmatprep.subr.mxu0 0.0
    %294 = vmatpush1.msra.mxu0 0.0
    %295 = vmatprep.subr.mxu0 0.0
    %296 = vmatpush1.msra.mxu0 0.0
    %297 = vmatprep.subr.mxu0 0.0
    %298 = vmatpush1.msra.mxu0 0.0
    %299 = vmatprep.subr.mxu0 0.0
    %300 = vmatpush1.msra.mxu0 0.0
    %301 = vmatprep.subr.mxu0 0.0
    %302 = vmatpush1.msra.mxu0 0.0
    %303 = vmatprep.subr.mxu0 0.0
    %304 = vmatpush1.msra.mxu0 0.0
    %305 = vmatprep.mubr.f32.mxu0 0.0
    %306 = vmatmul.mubr.f32.gmra.mrb[0].mxu0 %v239
    %v307 = vpop.f32.mrb[0].mxu0
    %v308 = vadd.f32 %v82, %v307
    %v309 = vpop.f32.mrb[0].mxu0
    %310 = vdwg.mxu0
    %v312 = vsel %vm91, %v46, 0
    %314 = vmatprep.subr.mxu0 0.0
    %315 = vmatpush1.msra.mxu0 %v59
    %316 = vmatprep.subr.mxu0 0.0
    %317 = vmatpush1.msra.mxu0 %v60
    %318 = vmatprep.subr.mxu0 0.0
    %319 = vmatpush1.msra.mxu0 %v61
    %320 = vmatprep.subr.mxu0 0.0
    %321 = vmatpush1.msra.mxu0 %v62
    %322 = vmatprep.subr.mxu0 0.0
    %323 = vmatpush1.msra.mxu0 0.0
    %324 = vmatprep.subr.mxu0 0.0
    %325 = vmatpush1.msra.mxu0 0.0
    %326 = vmatprep.subr.mxu0 0.0
    %327 = vmatpush1.msra.mxu0 0.0
    %328 = vmatprep.subr.mxu0 0.0
    %329 = vmatpush1.msra.mxu0 0.0
    %330 = vmatprep.subr.mxu0 0.0
    %331 = vmatpush1.msra.mxu0 0.0
    %332 = vmatprep.subr.mxu0 0.0
    %333 = vmatpush1.msra.mxu0 0.0
    %334 = vmatprep.subr.mxu0 0.0
    %335 = vmatpush1.msra.mxu0 0.0
    %336 = vmatprep.subr.mxu0 0.0
    %337 = vmatpush1.msra.mxu0 0.0
    %338 = vmatprep.subr.mxu0 0.0
    %339 = vmatpush1.msra.mxu0 0.0
    %340 = vmatprep.subr.mxu0 0.0
    %341 = vmatpush1.msra.mxu0 0.0
    %342 = vmatprep.subr.mxu0 0.0
    %343 = vmatpush1.msra.mxu0 0.0
    %344 = vmatprep.subr.mxu0 0.0
    %345 = vmatpush1.msra.mxu0 0.0
    %346 = vmatprep.subr.mxu0 0.0
    %347 = vmatpush1.msra.mxu0 0.0
    %348 = vmatprep.subr.mxu0 0.0
    %349 = vmatpush1.msra.mxu0 0.0
    %350 = vmatprep.subr.mxu0 0.0
    %351 = vmatpush1.msra.mxu0 0.0
    %352 = vmatprep.subr.mxu0 0.0
    %353 = vmatpush1.msra.mxu0 0.0
    %354 = vmatprep.subr.mxu0 0.0
    %355 = vmatpush1.msra.mxu0 0.0
    %356 = vmatprep.subr.mxu0 0.0
    %357 = vmatpush1.msra.mxu0 0.0
    %358 = vmatprep.subr.mxu0 0.0
    %359 = vmatpush1.msra.mxu0 0.0
    %360 = vmatprep.subr.mxu0 0.0
    %361 = vmatpush1.msra.mxu0 0.0
    %362 = vmatprep.subr.mxu0 0.0
    %363 = vmatpush1.msra.mxu0 0.0
    %364 = vmatprep.subr.mxu0 0.0
    %365 = vmatpush1.msra.mxu0 0.0
    %366 = vmatprep.subr.mxu0 0.0
    %367 = vmatpush1.msra.mxu0 0.0
    %368 = vmatprep.subr.mxu0 0.0
    %369 = vmatpush1.msra.mxu0 0.0
    %370 = vmatprep.subr.mxu0 0.0
    %371 = vmatpush1.msra.mxu0 0.0
    %372 = vmatprep.subr.mxu0 0.0
    %373 = vmatpush1.msra.mxu0 0.0
    %374 = vmatprep.subr.mxu0 0.0
    %375 = vmatpush1.msra.mxu0 0.0
    %376 = vmatprep.subr.mxu0 0.0
    %377 = vmatpush1.msra.mxu0 0.0
    %378 = vmatprep.mubr.f32.mxu0 0.0
    %379 = vmatmul.mubr.f32.gmra.mrb[0].mxu0 %v312
    %v380 = vpop.f32.mrb[0].mxu0
    %v381 = vadd.f32 %v86, %v380
    %v382 = vpop.f32.mrb[0].mxu0
    %383 = vdwg.mxu0
    %v384 = vxor.u32 %v162, 2147483648
    %v385 = vxor.u32 %v235, 2147483648
    %v386 = vxor.u32 %v308, 2147483648
    %v387 = vxor.u32 %v381, 2147483648
    %v388 = vmul.f32 %v384, 1.442695
    %v389 = vpow.pop %v388
    %v390 = vmul.f32 %v385, 1.442695
    %v391 = vpow.pop %v390
    %v392 = vmul.f32 %v386, 1.442695
    %v393 = vpow.pop %v392
    %v394 = vmul.f32 %v387, 1.442695
    %v395 = vpow.pop %v394
    %v396 = vadd.f32 %v389, 1.0
    %v397 = vadd.f32 %v391, 1.0
    %v398 = vadd.f32 %v393, 1.0
    %v399 = vadd.f32 %v395, 1.0
    %v400 = vrcp.pop %v396
    %v401 = vmul.f32 1.0, %v400
    %v402 = vrcp.pop %v397
    %v403 = vmul.f32 1.0, %v402
    %v404 = vrcp.pop %v398
    %v405 = vmul.f32 1.0, %v404
    %v406 = vrcp.pop %v399
    %v407 = vmul.f32 1.0, %v406
    %v408 = vmul.f32 %v162, %v401
    %v409 = vmul.f32 %v235, %v403
    %v410 = vmul.f32 %v308, %v405
    %v411 = vmul.f32 %v381, %v407
    %412 = vst [vmem:[#allocation7] sm:$0xff] %v408
    %413 = vst [vmem:[#allocation7 + $0x8] sm:$0xff] %v409
    %414 = vst [vmem:[#allocation7 + $0x10] sm:$0xff] %v410
    %415 = vst [vmem:[#allocation7 + $0x18] sm:$0xff] %v411
    // Predicated region
    $region22: #{tpu_custom_call.1} parent=1 // pred_check
      _
    $region23: #{tpu_custom_call.1} parent=1 // pred_check_branch
      %417 = sbr.rel (0) target = $region25
    $region24: #{tpu_custom_call.1} parent=1 // pred_region
      %s419 = ssub.s32 512, 512
      %420 = vsyncadd [#allocation4], %s419
      %s421 = sshll.u32 [#allocation7], 4
      %s422 = int_to_ptr.vmem [resolvable:$true] %s421
      %427 = dma.vmem_to_hbm [thread:$0]  %s422, 512, %s3, [#allocation4], 128, 128, 8
    $region25: #{tpu_custom_call.1} parent=1 // pred_fallthru
      _
    // Predicated region
    $region26: #{tpu_custom_call.1} parent=1 // pred_check
      _
    $region27: #{tpu_custom_call.1} parent=1 // pred_check_branch
      %429 = sbr.rel (0) target = $region29
    $region28: #{tpu_custom_call.1} parent=1 // pred_region
      %430 = dma.done [#allocation4], 512
    $region29: #{tpu_custom_call.1} parent=1 // pred_fallthru
      _
    %431 = vsyncpa [#allocation3], 1
    %432 = vsyncpa [#allocation6], 1
    %433 = vsyncpa [#allocation4], 1

</llo_original>
